<compile_context>
chip_gen: v7x
topology: tpu7x:2x2x1
jax: 0.10.0
libtpu: 0.0.40
codegen_flags: <defaults>
</compile_context>

<pallas_src>
import jax
import jax.numpy as jnp
import numpy as np
from jax.experimental import pallas as pl
from jax.experimental.pallas import tpu as pltpu


# -----------------------------------------------------------------------------
# 1) Zero-copy forward: output aliases the embedding table.
# -----------------------------------------------------------------------------
def _alias_forward_kernel(w_hbm_ref, o_hbm_ref, flag_ref):
    # Output buffer *is* the input buffer (input_output_aliases={0: 0}), so the
    # embedding table is already in place; no data movement is needed.
    del w_hbm_ref, o_hbm_ref
    # Keep the Mosaic body non-empty with a single scalar SMEM store; this
    # touches zero HBM bytes.
    flag_ref[0] = jnp.int32(1)


def node_embedding_forward(weight: jax.Array) -> jax.Array:
    """Pallas equivalent of NodeEmbeddingLayer.forward().

    Returns the (num_nodes, embedding_dim) table. The Pallas output aliases the
    input buffer, so no HBM traffic is generated by the kernel itself. To make
    it fully copy-free end-to-end, call under
    `jax.jit(node_embedding_forward, donate_argnums=0)`.
    """
    return pl.pallas_call(
        _alias_forward_kernel,
        out_shape=jax.ShapeDtypeStruct(weight.shape, weight.dtype),
        in_specs=[pl.BlockSpec(memory_space=pl.ANY)],   # stay in HBM, no auto-DMA
        out_specs=pl.BlockSpec(memory_space=pl.ANY),
        scratch_shapes=[pltpu.SMEM((1,), jnp.int32)],
        input_output_aliases={0: 0},                    # output == input buffer
    )(weight)


# -----------------------------------------------------------------------------
# 2) Materialized copy (when a fresh buffer is genuinely needed): one HBM->HBM
#    DMA, no VMEM staging, no grid.
# -----------------------------------------------------------------------------
def _dma_copy_kernel(src_hbm_ref, dst_hbm_ref, copy_sem):
    cp = pltpu.make_async_copy(src_hbm_ref, dst_hbm_ref, copy_sem)
    cp.start()
    cp.wait()


def node_embedding_forward_copy(weight: jax.Array) -> jax.Array:
    """Materialize a fresh copy of the embedding table via a single DMA."""
    return pl.pallas_call(
        _dma_copy_kernel,
        out_shape=jax.ShapeDtypeStruct(weight.shape, weight.dtype),
        in_specs=[pl.BlockSpec(memory_space=pl.ANY)],
        out_specs=pl.BlockSpec(memory_space=pl.ANY),
        scratch_shapes=[pltpu.SemaphoreType.DMA],
    )(weight)


if __name__ == "__main__":
    # Module hyperparameters (small, consistent with the reference script).
    num_nodes = 8
    embedding_dim = 16

    # Deterministic parameter init matching nn.Embedding default: N(0, 1).
    key = jax.random.PRNGKey(0)
    node_embeddings_weight = jax.random.normal(
        key, (num_nodes, embedding_dim), dtype=jnp.float32
    )
    # Host-side reference copy (robust against any buffer aliasing/donation).
    weight_host = np.asarray(node_embeddings_weight)

    # Zero-copy (aliased) forward — the faithful PyTorch semantics.
    out_view = jax.block_until_ready(node_embedding_forward(node_embeddings_weight))
    assert out_view.shape == (num_nodes, embedding_dim)
    assert out_view.dtype == jnp.float32
    assert np.array_equal(np.asarray(out_view), weight_host)

    # Materialized-copy forward (single HBM->HBM DMA).
    out_copy = jax.block_until_ready(
        node_embedding_forward_copy(node_embeddings_weight)
    )
    assert out_copy.shape == (num_nodes, embedding_dim)
    assert out_copy.dtype == jnp.float32
    assert np.array_equal(np.asarray(out_copy), weight_host)

    print("KERNEL_OK")
</pallas_src>

<mosaic_0001>
module attributes {stable_mosaic.version = 11 : i64} {
  func.func @_alias_forward_kernel(%arg0: memref<8x16xf32, #tpu.memory_space<any>>, %arg1: memref<8x16xf32, #tpu.memory_space<any>>, %arg2: memref<1xi32, #tpu.memory_space<smem>>) attributes {dimension_semantics = [], scalar_prefetch = 0 : i64, scratch_operands = 1 : i64, tpu.core_type = #tpu.core_type<tc>} {
    %c1_i32 = arith.constant 1 : i32
    %c0 = arith.constant 0 : index
    %0 = memref.load %arg2[%c0] : memref<1xi32, #tpu.memory_space<smem>>
    memref.store %c1_i32, %arg2[%c0] : memref<1xi32, #tpu.memory_space<smem>>
    return
  }
}

</mosaic_0001>

<llo_original>
// kernel: tpu_custom_call.1
$region0: #{tpu_custom_call.1}
  #allocation0 [shape = 'u32[]', space=smem, size = 0x4, offset = 0x4, fixed_abs, tag = 'smem constant byte address 0x4 - core index']
  #allocation1 [shape = 'u32[144,128]{1,0:T(1,128)}', space=vmem, size = 0x12000, scoped, tag = 'internal scratch']
  #allocation2 [shape = 's32[1]{0:T(128)}', space=smem, size = 0x200, scoped, tag = 'scratch operand']
  %s0 = inlined_call_operand.hbm [shape: f32[8,16], index: 0, kind: input, shape index: {}, may-alias: {0,1}]
  %s1 = inlined_call_operand.hbm [shape: f32[8,16], index: 1, kind: output, shape index: {}, may-alias: {0,1}]
  %s2 = sld [smem:[#allocation0]]
  $region2: #{tpu_custom_call.1} parent=0
    _
  %s4 = ssub.s32 1, %s2
  %s5 = scalar_select 0, %s4, %s2
  %s6 = scalar_lea.smem [#allocation2], 0
  %7 = sst [smem:[%s6]] 1

</llo_original>
